<compile_context>
chip_gen: v5e
topology: v5e:2x2
jax: 0.10.0
libtpu: 0.0.40
codegen_flags: <defaults>
</compile_context>

<pallas_src>
import functools

import jax
import jax.numpy as jnp
from jax.experimental import pallas as pl
from jax.experimental.pallas import tpu as pltpu


def _round_up(x, m):
    return ((x + m - 1) // m) * m


def _cdiv(a, b):
    return (a + b - 1) // b


def _sigmoid_bce_kernel(emb_ref, wseg_ref, b_ref, tgt_ref, out_ref, acc_ref,
                        *, n_total, tile_r, pack, inner_tiles):
    c = pl.program_id(0)   # parallel chunk axis (both TCs on v7x)
    t = pl.program_id(1)   # reduction axis within a chunk

    @pl.when(t == 0)
    def _init():
        acc_ref[...] = jnp.zeros_like(acc_ref)

    # Cast after load (inputs are streamed in their original dtype).
    x = emb_ref[...].astype(jnp.float32)                       # (tile_r, pack*D)
    # One MXU dot against the block-diagonal weight -> `pack` logits per packed row.
    logits = jnp.dot(x, wseg_ref[...],
                     preferred_element_type=jnp.float32,
                     precision=jax.lax.Precision.HIGHEST)       # (tile_r, pack)
    logits = logits + b_ref[0, 0]

    # Single softplus; log p = z - sp, log(1-p) = -sp; -100 clamp = PyTorch BCELoss.
    sp = jnp.maximum(logits, 0.0) + jnp.log1p(jnp.exp(-jnp.abs(logits)))
    log_p = jnp.maximum(logits - sp, -100.0)
    log_1mp = jnp.maximum(-sp, -100.0)
    tgt = tgt_ref[...].astype(jnp.float32)                      # (tile_r, pack)
    per_elem = -(tgt * log_p + (1.0 - tgt) * log_1mp)           # (tile_r, pack)

    g_tile = c * inner_tiles + t
    tile_end = (g_tile + 1) * (tile_r * pack)   # exclusive original-row index bound

    @pl.when(tile_end <= n_total)
    def _full_tile():                             # no masking cost on full tiles
        acc_ref[...] += jnp.sum(per_elem, axis=0, keepdims=True)

    @pl.when(tile_end > n_total)
    def _ragged_tile():                           # mask garbage / padded tail rows
        row = jax.lax.broadcasted_iota(jnp.int32, (tile_r, pack), 0)
        col = jax.lax.broadcasted_iota(jnp.int32, (tile_r, pack), 1)
        idx = (g_tile * tile_r + row) * pack + col
        masked = jnp.where(idx < n_total, per_elem, 0.0)
        acc_ref[...] += jnp.sum(masked, axis=0, keepdims=True)

    @pl.when(t == pl.num_programs(1) - 1)
    def _finalize():
        out_ref[...] = jnp.sum(acc_ref[...]).reshape(1, 1, 1)


def sigmoid_bce_loss(embedding, weight, bias, target, *, tile_rows=4096, num_chunks=2):
    """embedding: (N, D), weight: (1, D) (nn.Linear layout), bias: (1,), target: (N, 1).
    Returns scalar mean BCE(sigmoid(embedding @ W^T + b), target)."""
    N, D = embedding.shape
    target = target.reshape(N, 1)

    # Lane-dense packing: fold `pack` consecutive samples into one row when D | 128.
    pack = 128 // D if (D <= 128 and 128 % D == 0) else 1
    n_pk = _round_up(N, pack)
    emb, tgt = embedding, target
    if n_pk != N:  # rare, at most pack-1 rows of padding (masked in-kernel)
        emb = jnp.pad(emb, ((0, n_pk - N), (0, 0)))
        tgt = jnp.pad(tgt, ((0, n_pk - N), (0, 0)))
    R = n_pk // pack
    pw = pack * D
    emb_p = emb.reshape(R, pw)      # free bitcast for contiguous row-major input
    tgt_p = tgt.reshape(R, pack)

    # Block-diagonal weight: wseg[g*D + k, g] = w[k]; one dot -> `pack` logits per row.
    w_flat = weight.reshape(D).astype(jnp.float32)
    wseg = jnp.kron(jnp.eye(pack, dtype=jnp.float32), w_flat.reshape(D, 1))  # (pw, pack)
    b = jnp.asarray(bias, jnp.float32).reshape(1, 1)

    # Tile sizing: big tiles for the mem-bound stream; only pad (tiny) if the array is
    # smaller than one 8-sublane tile. Large-N ragged tails are handled by the mask.
    tile_r = min(_round_up(tile_rows, 8), _round_up(R, 8))
    if R < tile_r:
        emb_p = jnp.pad(emb_p, ((0, tile_r - R), (0, 0)))
        tgt_p = jnp.pad(tgt_p, ((0, tile_r - R), (0, 0)))
        R = tile_r

    total_tiles = _cdiv(R, tile_r)
    chunks = max(1, min(num_chunks, total_tiles))
    inner = _cdiv(total_tiles, chunks)

    kernel = functools.partial(_sigmoid_bce_kernel, n_total=N, tile_r=tile_r,
                               pack=pack, inner_tiles=inner)

    # Clamp excess tiles (chunks*inner may exceed total_tiles); they are fully masked.
    def row_map(c, t):
        return (jnp.minimum(c * inner + t, total_tiles - 1), 0)

    # VMEM estimate: double-buffered emb + lane-padded target + resident weight.
    vmem_est = 2 * tile_r * pw * 4 + 2 * tile_r * 128 * 4 + pw * 128 * 4 + (1 << 20)
    cparams = dict(dimension_semantics=("parallel", "arbitrary"))
    if vmem_est > (14 << 20):
        cparams["vmem_limit_bytes"] = min(vmem_est + (4 << 20), 100 << 20)

    partials = pl.pallas_call(
        kernel,
        out_shape=jax.ShapeDtypeStruct((chunks, 1, 1), jnp.float32),
        grid=(chunks, inner),
        in_specs=[
            pl.BlockSpec((tile_r, pw), row_map),                 # packed embedding tile
            pl.BlockSpec((pw, pack), lambda c, t: (0, 0)),       # block-diag weight (resident)
            pl.BlockSpec(memory_space=pltpu.MemorySpace.SMEM),   # bias scalar in SMEM
            pl.BlockSpec((tile_r, pack), row_map),               # packed target tile
        ],
        out_specs=pl.BlockSpec((1, 1, 1), lambda c, t: (c, 0, 0)),
        scratch_shapes=[pltpu.VMEM((1, pack), jnp.float32)],
        compiler_params=pltpu.CompilerParams(**cparams),
    )(emb_p, wseg, b, tgt_p)

    return jnp.sum(partials) / N


def _reference_loss(embedding, weight, bias, target):
    # PyTorch Sigmoid + BCELoss semantics (log terms clamped at -100, mean reduction).
    logits = embedding @ weight.reshape(-1, 1) + bias.reshape(())
    p = jax.nn.sigmoid(logits)
    return -jnp.mean(target * jnp.maximum(jnp.log(p), -100.0)
                     + (1.0 - target) * jnp.maximum(jnp.log(1.0 - p), -100.0))


if __name__ == "__main__":
    key = jax.random.PRNGKey(0)
    k_emb, k_tgt, k_w, k_b, k_emb2, k_tgt2 = jax.random.split(key, 6)

    N = 8            # batch
    D = 32           # embedding_dim

    embedding = jax.random.normal(k_emb, (N, D), dtype=jnp.float32)
    target = jax.random.uniform(k_tgt, (N, 1), dtype=jnp.float32)

    # Deterministic nn.Linear(D, 1)-style init: U(-1/sqrt(D), 1/sqrt(D)).
    bound = 1.0 / (D ** 0.5)
    weight = jax.random.uniform(k_w, (1, D), dtype=jnp.float32,
                                minval=-bound, maxval=bound)
    bias = jax.random.uniform(k_b, (1,), dtype=jnp.float32,
                              minval=-bound, maxval=bound)

    loss = sigmoid_bce_loss(embedding, weight, bias, target)
    jax.block_until_ready(loss)
    ref = _reference_loss(embedding, weight, bias, target)
    assert jnp.allclose(loss, ref, atol=1e-5, rtol=1e-5), (loss, ref)

    # Multi-tile 2D grid (parallel chunk axis), ragged last tile, clamped excess tile.
    N2 = 300
    embedding2 = jax.random.normal(k_emb2, (N2, D), dtype=jnp.float32)
    target2 = jax.random.uniform(k_tgt2, (N2, 1), dtype=jnp.float32)
    loss2 = sigmoid_bce_loss(embedding2, weight, bias, target2,
                             tile_rows=32, num_chunks=2)
    jax.block_until_ready(loss2)
    ref2 = _reference_loss(embedding2, weight, bias, target2)
    assert jnp.allclose(loss2, ref2, atol=1e-5, rtol=1e-5), (loss2, ref2)

    # In-kernel dtype cast path: stream bf16 embedding, math stays f32 inside.
    emb_bf16 = embedding2[:256].astype(jnp.bfloat16)
    loss3 = sigmoid_bce_loss(emb_bf16, weight, bias, target2[:256])
    jax.block_until_ready(loss3)
    ref3 = _reference_loss(emb_bf16.astype(jnp.float32), weight, bias, target2[:256])
    assert jnp.allclose(loss3, ref3, atol=1e-5, rtol=1e-5), (loss3, ref3)

    print("KERNEL_OK")
</pallas_src>

<mosaic_0001>
module attributes {stable_mosaic.version = 11 : i64} {
  func.func @_sigmoid_bce_kernel(%arg0: i32, %arg1: i32, %arg2: memref<8x128xf32, #tpu.memory_space<vmem>>, %arg3: memref<128x4xf32, #tpu.memory_space<vmem>>, %arg4: memref<1x1xf32, #tpu.memory_space<smem>>, %arg5: memref<8x4xf32, #tpu.memory_space<vmem>>, %arg6: memref<1x1x1xf32, #tpu.memory_space<vmem>>, %arg7: memref<1x4xf32, #tpu.memory_space<vmem>>) attributes {dimension_semantics = [#tpu.dimension_semantics<parallel>, #tpu.dimension_semantics<arbitrary>], iteration_bounds = array<i64: 1, 1>, scalar_prefetch = 0 : i64, scratch_operands = 1 : i64, tpu.core_type = #tpu.core_type<tc>, window_params = [{transform_indices = @transform_0, window_bounds = array<i64: 8, 128>}, {pipeline_mode = #tpu.pipeline_mode<synchronous>, transform_indices = @transform_1, window_bounds = array<i64: 128, 4>}, {transform_indices = @transform_2, window_bounds = array<i64: 1, 1>}, {transform_indices = @transform_3, window_bounds = array<i64: 8, 4>}, {transform_indices = @transform_4, window_bounds = array<i64: 1, 1, 1>}]} {
    %c0_i32 = arith.constant 0 : i32
    %0 = arith.cmpi eq, %arg1, %c0_i32 : i32
    %1 = arith.extui %0 : i1 to i32
    %c0_i32_0 = arith.constant 0 : i32
    %2 = arith.cmpi ne, %1, %c0_i32_0 : i32
    scf.if %2 {
      %cst_21 = arith.constant 0.000000e+00 : f32
      %45 = vector.broadcast %cst_21 : f32 to vector<1x4xf32>
      %c0_22 = arith.constant 0 : index
      %c0_23 = arith.constant 0 : index
      %46 = vector.load %arg7[%c0_22, %c0_23] : memref<1x4xf32, #tpu.memory_space<vmem>>, vector<1x4xf32>
      tpu.vector_store %arg7[%c0_22, %c0_23], %45 {strides = array<i32>} : memref<1x4xf32, #tpu.memory_space<vmem>>, vector<1x4xf32>,
    } else {
    }
    %c0 = arith.constant 0 : index
    %c0_1 = arith.constant 0 : index
    %3 = vector.load %arg2[%c0, %c0_1] : memref<8x128xf32, #tpu.memory_space<vmem>>, vector<8x128xf32>
    %c0_2 = arith.constant 0 : index
    %c0_3 = arith.constant 0 : index
    %4 = vector.load %arg3[%c0_2, %c0_3] : memref<128x4xf32, #tpu.memory_space<vmem>>, vector<128x4xf32>
    %cst = arith.constant dense<0.000000e+00> : vector<8x4xf32>
    %5 = tpu.matmul %3, %4, %cst {dimension_numbers = #tpu.dot_dimension_numbers<[1], [0], [0], [1], [0, 0, 1, 1], [], []>, precision = #tpu.contract_precision<fp32>} : vector<8x128xf32>, vector<128x4xf32>, vector<8x4xf32> -> vector<8x4xf32>
    %c0_4 = arith.constant 0 : index
    %c0_5 = arith.constant 0 : index
    %6 = memref.load %arg4[%c0_4, %c0_5] : memref<1x1xf32, #tpu.memory_space<smem>>
    %7 = vector.broadcast %6 : f32 to vector<8x4xf32>
    %8 = arith.addf %5, %7 : vector<8x4xf32>
    %cst_6 = arith.constant 0.000000e+00 : f32
    %9 = vector.broadcast %cst_6 : f32 to vector<8x4xf32>
    %10 = arith.maximumf %8, %9 : vector<8x4xf32>
    %11 = math.absf %8 : vector<8x4xf32>
    %cst_7 = arith.constant 0.000000e+00 : f32
    %12 = vector.broadcast %cst_7 : f32 to vector<8x4xf32>
    %13 = arith.subf %12, %11 : vector<8x4xf32>
    %14 = math.exp %13 : vector<8x4xf32>
    %15 = math.log1p %14 : vector<8x4xf32>
    %16 = arith.addf %10, %15 : vector<8x4xf32>
    %17 = arith.subf %8, %16 : vector<8x4xf32>
    %cst_8 = arith.constant -1.000000e+02 : f32
    %18 = vector.broadcast %cst_8 : f32 to vector<8x4xf32>
    %19 = arith.maximumf %17, %18 : vector<8x4xf32>
    %cst_9 = arith.constant 0.000000e+00 : f32
    %20 = vector.broadcast %cst_9 : f32 to vector<8x4xf32>
    %21 = arith.subf %20, %16 : vector<8x4xf32>
    %cst_10 = arith.constant -1.000000e+02 : f32
    %22 = vector.broadcast %cst_10 : f32 to vector<8x4xf32>
    %23 = arith.maximumf %21, %22 : vector<8x4xf32>
    %c0_11 = arith.constant 0 : index
    %c0_12 = arith.constant 0 : index
    %24 = vector.load %arg5[%c0_11, %c0_12] : memref<8x4xf32, #tpu.memory_space<vmem>>, vector<8x4xf32>
    %25 = arith.mulf %24, %19 : vector<8x4xf32>
    %cst_13 = arith.constant 1.000000e+00 : f32
    %26 = vector.broadcast %cst_13 : f32 to vector<8x4xf32>
    %27 = arith.subf %26, %24 : vector<8x4xf32>
    %28 = arith.mulf %27, %23 : vector<8x4xf32>
    %29 = arith.addf %25, %28 : vector<8x4xf32>
    %cst_14 = arith.constant 0.000000e+00 : f32
    %30 = vector.broadcast %cst_14 : f32 to vector<8x4xf32>
    %31 = arith.subf %30, %29 : vector<8x4xf32>
    %c1_i32 = arith.constant 1 : i32
    %32 = arith.muli %arg0, %c1_i32 : i32
    %33 = arith.addi %32, %arg1 : i32
    %c1_i32_15 = arith.constant 1 : i32
    %34 = arith.addi %33, %c1_i32_15 : i32
    %c32_i32 = arith.constant 32 : i32
    %35 = arith.muli %34, %c32_i32 : i32
    %c8_i32 = arith.constant 8 : i32
    %36 = arith.cmpi sle, %35, %c8_i32 : i32
    %37 = arith.extui %36 : i1 to i32
    %c0_i32_16 = arith.constant 0 : i32
    %38 = arith.cmpi ne, %37, %c0_i32_16 : i32
    scf.if %38 {
      %c0_21 = arith.constant 0 : index
      %c0_22 = arith.constant 0 : index
      %45 = vector.load %arg7[%c0_21, %c0_22] : memref<1x4xf32, #tpu.memory_space<vmem>>, vector<1x4xf32>
      %cst_23 = arith.constant dense<0.000000e+00> : vector<4xf32>
      %46 = vector.multi_reduction <add>, %31, %cst_23 [0] : vector<8x4xf32> to vector<4xf32>
      %47 = vector.shape_cast %46 : vector<4xf32> to vector<1x4xf32>
      %48 = arith.addf %45, %47 : vector<1x4xf32>
      %c0_24 = arith.constant 0 : index
      %c0_25 = arith.constant 0 : index
      %49 = vector.load %arg7[%c0_24, %c0_25] : memref<1x4xf32, #tpu.memory_space<vmem>>, vector<1x4xf32>
      tpu.vector_store %arg7[%c0_24, %c0_25], %48 {strides = array<i32>} : memref<1x4xf32, #tpu.memory_space<vmem>>, vector<1x4xf32>,
    } else {
    }
    %c8_i32_17 = arith.constant 8 : i32
    %39 = arith.cmpi sgt, %35, %c8_i32_17 : i32
    %40 = arith.extui %39 : i1 to i32
    %c0_i32_18 = arith.constant 0 : i32
    %41 = arith.cmpi ne, %40, %c0_i32_18 : i32
    scf.if %41 {
      %45 = tpu.iota {dimensions = array<i32: 0>} : vector<8x4xi32>
      %46 = tpu.iota {dimensions = array<i32: 1>} : vector<8x4xi32>
      %c8_i32_21 = arith.constant 8 : i32
      %47 = arith.muli %33, %c8_i32_21 : i32
      %48 = vector.broadcast %47 : i32 to vector<8x4xi32>
      %49 = arith.addi %48, %45 : vector<8x4xi32>
      %c4_i32 = arith.constant 4 : i32
      %50 = vector.broadcast %c4_i32 : i32 to vector<8x4xi32>
      %51 = arith.muli %49, %50 : vector<8x4xi32>
      %52 = arith.addi %51, %46 : vector<8x4xi32>
      %c8_i32_22 = arith.constant 8 : i32
      %53 = vector.broadcast %c8_i32_22 : i32 to vector<8x4xi32>
      %54 = arith.cmpi slt, %52, %53 : vector<8x4xi32>
      %cst_23 = arith.constant 0.000000e+00 : f32
      %55 = vector.broadcast %cst_23 : f32 to vector<8x4xf32>
      %56 = arith.select %54, %31, %55 : vector<8x4xi1>, vector<8x4xf32>
      %c0_24 = arith.constant 0 : index
      %c0_25 = arith.constant 0 : index
      %57 = vector.load %arg7[%c0_24, %c0_25] : memref<1x4xf32, #tpu.memory_space<vmem>>, vector<1x4xf32>
      %cst_26 = arith.constant dense<0.000000e+00> : vector<4xf32>
      %58 = vector.multi_reduction <add>, %56, %cst_26 [0] : vector<8x4xf32> to vector<4xf32>
      %59 = vector.shape_cast %58 : vector<4xf32> to vector<1x4xf32>
      %60 = arith.addf %57, %59 : vector<1x4xf32>
      %c0_27 = arith.constant 0 : index
      %c0_28 = arith.constant 0 : index
      %61 = vector.load %arg7[%c0_27, %c0_28] : memref<1x4xf32, #tpu.memory_space<vmem>>, vector<1x4xf32>
      tpu.vector_store %arg7[%c0_27, %c0_28], %60 {strides = array<i32>} : memref<1x4xf32, #tpu.memory_space<vmem>>, vector<1x4xf32>,
    } else {
    }
    %c0_i32_19 = arith.constant 0 : i32
    %42 = arith.cmpi eq, %arg1, %c0_i32_19 : i32
    %43 = arith.extui %42 : i1 to i32
    %c0_i32_20 = arith.constant 0 : i32
    %44 = arith.cmpi ne, %43, %c0_i32_20 : i32
    scf.if %44 {
      %c0_21 = arith.constant 0 : index
      %c0_22 = arith.constant 0 : index
      %45 = vector.load %arg7[%c0_21, %c0_22] : memref<1x4xf32, #tpu.memory_space<vmem>>, vector<1x4xf32>
      %46 = vector.shape_cast %45 : vector<1x4xf32> to vector<1x1x4xf32>
      %cst_23 = arith.constant dense<0.000000e+00> : vector<1xf32>
      %47 = vector.multi_reduction <add>, %46, %cst_23 [1, 2] : vector<1x1x4xf32> to vector<1xf32>
      %48 = vector.shape_cast %47 : vector<1xf32> to vector<1x1x1xf32>
      %49 = vector.extract %48[0, 0, 0] : f32 from vector<1x1x1xf32>
      %50 = vector.broadcast %49 : f32 to vector<1x1x1xf32>
      %c0_24 = arith.constant 0 : index
      %c0_25 = arith.constant 0 : index
      %c0_26 = arith.constant 0 : index
      %51 = vector.load %arg6[%c0_24, %c0_25, %c0_26] : memref<1x1x1xf32, #tpu.memory_space<vmem>>, vector<1x1x1xf32>
      tpu.vector_store %arg6[%c0_24, %c0_25, %c0_26], %50 {strides = array<i32>} : memref<1x1x1xf32, #tpu.memory_space<vmem>>, vector<1x1x1xf32>,
    } else {
    }
    return
  }
  func.func @transform_0(%arg0: i32, %arg1: i32) -> (i32, i32) {
    %c1_i32 = arith.constant 1 : i32
    %0 = arith.muli %arg0, %c1_i32 : i32
    %1 = arith.addi %0, %arg1 : i32
    %c0_i32 = arith.constant 0 : i32
    %2 = arith.minsi %1, %c0_i32 : i32
    %c0_i32_0 = arith.constant 0 : i32
    %c0_i32_1 = arith.constant 0 : i32
    return %2, %c0_i32_0 : i32, i32
  }
  func.func @transform_1(%arg0: i32, %arg1: i32) -> (i32, i32) {
    %c0_i32 = arith.constant 0 : i32
    %c0_i32_0 = arith.constant 0 : i32
    %c0_i32_1 = arith.constant 0 : i32
    return %c0_i32, %c0_i32_0 : i32, i32
  }
  func.func @transform_2(%arg0: i32, %arg1: i32) -> (i32, i32) {
    %c0_i32 = arith.constant 0 : i32
    %c0_i32_0 = arith.constant 0 : i32
    %c0_i32_1 = arith.constant 0 : i32
    return %c0_i32, %c0_i32_0 : i32, i32
  }
  func.func @transform_3(%arg0: i32, %arg1: i32) -> (i32, i32) {
    %c1_i32 = arith.constant 1 : i32
    %0 = arith.muli %arg0, %c1_i32 : i32
    %1 = arith.addi %0, %arg1 : i32
    %c0_i32 = arith.constant 0 : i32
    %2 = arith.minsi %1, %c0_i32 : i32
    %c0_i32_0 = arith.constant 0 : i32
    %c0_i32_1 = arith.constant 0 : i32
    return %2, %c0_i32_0 : i32, i32
  }
  func.func @transform_4(%arg0: i32, %arg1: i32) -> (i32, i32, i32) {
    %c0_i32 = arith.constant 0 : i32
    %c0_i32_0 = arith.constant 0 : i32
    %c0_i32_1 = arith.constant 0 : i32
    return %arg0, %c0_i32, %c0_i32_0 : i32, i32, i32
  }
}

</mosaic_0001>

<llo_original>
// kernel: tpu_custom_call.1
$region0: #{tpu_custom_call.1}
  #allocation0 [shape = 'u32[]', space=smem, size = 0x4, offset = 0x4, fixed_abs, tag = 'smem constant byte address 0x4 - core index']
  #allocation1 [shape = 'u32[72,128]{1,0:T(1,128)}', space=vmem, size = 0x9000, scoped, tag = 'internal scratch']
  #allocation2 [shape = 'f32[1,4]{1,0:T(1,128)}', space=vmem, size = 0x200, scoped, tag = 'scratch operand']
  #allocation3 [shape = 'f32[1,1]{1,0:T(1,128)S(6)}', space=smem, size = 0x200, scoped, tag = 'scoped memory for tpu_custom_call.1']
  %s0 = inlined_call_operand.vmem [shape: f32[8,128], index: 0, kind: input, shape index: {}]
  %s1 = inlined_call_operand.vmem [shape: f32[128,4], index: 1, kind: input, shape index: {}]
  %s2 = inlined_call_operand.<no memory space> [shape: f32[1,1], index: 2, kind: input, shape index: {}]
  %s3 = inlined_call_operand.vmem [shape: f32[8,4], index: 3, kind: input, shape index: {}]
  %s4 = inlined_call_operand.hbm [shape: f32[1,1,1], index: 4, kind: output, shape index: {}]
  %s5 = sld [smem:[#allocation0]]
  $region42: #{tpu_custom_call.1} parent=0
    _
  %s7 = ssub.s32 1, %s5
  %s8 = scalar_select 0, %s7, %s5
  %9 = sst [smem:[#allocation3]] %s2
  $region1: #{tpu_custom_call.1} parent=0
    #allocation4 [shape = 'u8[512]{0}', space=vmem, size = 0x400, scoped, tag = 'output window, operand 0, single buffered']
    #allocation5 [shape = 's32[1]{0}', space=sflag, size = 0x4, scoped, tag = 'scoped memory for tpu_custom_call.1']
    %10 = vsyncpa [#allocation5], 0
    // Predicated region
    $region2: #{tpu_custom_call.1} parent=1 // pred_check
      _
    $region3: #{tpu_custom_call.1} parent=1 // pred_check_branch
      %12 = sbr.rel (0) target = $region5
    $region4: #{tpu_custom_call.1} parent=1 // pred_region
      %s13 = sadd.s32 0, 0
      %p14 = scmp.lt.s32.totalorder %s13, 0
      %s15 = scalar_select %p14, %s13, 0
      %p16 = scmp.lt.s32.totalorder %s15, 0
      %s17 = scalar_select %p16, %s15, 0
      %s18 = smul.addr %s17, 8
      %s19 = scalar_lea.vmem %s0, %s18
      %s20 = sadd.s32 0, 0
      %p21 = scmp.lt.s32.totalorder %s20, 0
      %s22 = scalar_select %p21, %s20, 0
    $region5: #{tpu_custom_call.1} parent=1 // pred_fallthru
      _
    // Predicated region
    $region6: #{tpu_custom_call.1} parent=1 // pred_check
      _
    $region7: #{tpu_custom_call.1} parent=1 // pred_check_branch
      %24 = sbr.rel (0) target = $region9
    $region8: #{tpu_custom_call.1} parent=1 // pred_region
      _
    $region9: #{tpu_custom_call.1} parent=1 // pred_fallthru
      _
    // Predicated region
    $region10: #{tpu_custom_call.1} parent=1 // pred_check
      _
    $region11: #{tpu_custom_call.1} parent=1 // pred_check_branch
      %26 = sbr.rel (0) target = $region13
    $region12: #{tpu_custom_call.1} parent=1 // pred_region
      _
    $region13: #{tpu_custom_call.1} parent=1 // pred_fallthru
      _
    // Predicated region
    $region14: #{tpu_custom_call.1} parent=1 // pred_check
      _
    $region15: #{tpu_custom_call.1} parent=1 // pred_check_branch
      %28 = sbr.rel (0) target = $region17
    $region16: #{tpu_custom_call.1} parent=1 // pred_region
      %s29 = sadd.s32 0, 0
      %p30 = scmp.lt.s32.totalorder %s29, 0
      %s31 = scalar_select %p30, %s29, 0
      %p32 = scmp.lt.s32.totalorder %s31, 0
      %s33 = scalar_select %p32, %s31, 0
      %s34 = smul.addr %s33, 8
      %s35 = scalar_lea.vmem %s3, %s34
      %s36 = sadd.s32 0, 0
      %p37 = scmp.lt.s32.totalorder %s36, 0
      %s38 = scalar_select %p37, %s36, 0
    $region17: #{tpu_custom_call.1} parent=1 // pred_fallthru
      _
    %s39 = sadd.s32 0, 0
    %p40 = scmp.lt.s32.totalorder %s39, 0
    %s41 = scalar_select %p40, %s39, 0
    %p42 = scmp.lt.s32.totalorder %s41, 0
    %s43 = scalar_select %p42, %s41, 0
    %s44 = smul.addr %s43, 8
    %s45 = scalar_lea.vmem %s0, %s44
    %s46 = sadd.s32 0, 0
    %p47 = scmp.lt.s32.totalorder %s46, 0
    %s48 = scalar_select %p47, %s46, 0
    %p49 = scmp.lt.s32.totalorder %s48, 0
    %s50 = scalar_select %p49, %s48, 0
    %s51 = smul.addr %s50, 8
    %s52 = scalar_lea.vmem %s3, %s51
    %s53 = sadd.s32 0, 0
    %p54 = scmp.lt.s32.totalorder %s53, 0
    %s55 = scalar_select %p54, %s53, 0
    %p56 = scmp.lt.s32.totalorder %s55, 0
    %s57 = scalar_select %p56, %s55, 0
    %s58 = smul.addr %s57, 8
    %s59 = scalar_lea.vmem %s0, %s58
    %s60 = sadd.s32 0, 0
    %p61 = scmp.lt.s32.totalorder %s60, 0
    %s62 = scalar_select %p61, %s60, 0
    %s63 = sadd.s32 0, 0
    %p64 = scmp.lt.s32.totalorder %s63, 0
    %s65 = scalar_select %p64, %s63, 0
    %p66 = scmp.lt.s32.totalorder %s65, 0
    %s67 = scalar_select %p66, %s65, 0
    %s68 = smul.addr %s67, 8
    %s69 = scalar_lea.vmem %s3, %s68
    %s70 = sadd.s32 0, 0
    %p71 = scmp.lt.s32.totalorder %s70, 0
    %s72 = scalar_select %p71, %s70, 0
    %p73 = scmp.eq.s32.totalorder 0, 0
    // Predicated region
    $region18: #{tpu_custom_call.1} parent=1 // pred_check
      %p74 = pneg %p73
    $region19: #{tpu_custom_call.1} parent=1 // pred_check_branch
      %76 = sbr.rel (%p74) target = $region21
    $region20: #{tpu_custom_call.1} parent=1 // pred_region
      %vm77 = vcmask 24576
      %78 = vst.msk [vmem:[#allocation2] sm:$0x1] %vm77, 0.0
    $region21: #{tpu_custom_call.1} parent=1 // pred_fallthru
      _
    %v79 = vld [vmem:[%s59] sm:$0xff]
    %v80 = vld [vmem:[%s1] sm:$0xff]
    %v81 = vld [vmem:[%s1 + $0x8] sm:$0xff]
    %v82 = vld [vmem:[%s1 + $0x10] sm:$0xff]
    %v83 = vld [vmem:[%s1 + $0x18] sm:$0xff]
    %v84 = vld [vmem:[%s1 + $0x20] sm:$0xff]
    %v85 = vld [vmem:[%s1 + $0x28] sm:$0xff]
    %v86 = vld [vmem:[%s1 + $0x30] sm:$0xff]
    %v87 = vld [vmem:[%s1 + $0x38] sm:$0xff]
    %v88 = vld [vmem:[%s1 + $0x40] sm:$0xff]
    %v89 = vld [vmem:[%s1 + $0x48] sm:$0xff]
    %v90 = vld [vmem:[%s1 + $0x50] sm:$0xff]
    %v91 = vld [vmem:[%s1 + $0x58] sm:$0xff]
    %v92 = vld [vmem:[%s1 + $0x60] sm:$0xff]
    %v93 = vld [vmem:[%s1 + $0x68] sm:$0xff]
    %v94 = vld [vmem:[%s1 + $0x70] sm:$0xff]
    %v95 = vld [vmem:[%s1 + $0x78] sm:$0xff]
    %s96 = sld [smem:[#allocation3]]
    %v97 = vstv %s96
    %v98 = vand.u32 %v95, 4294901760
    %99 = vmatpush.msra.mxu0 %v98
    %v100 = vand.u32 %v94, 4294901760
    %101 = vmatpush.msra.mxu0 %v100
    %v102 = vand.u32 %v93, 4294901760
    %103 = vmatpush.msra.mxu0 %v102
    %v104 = vand.u32 %v92, 4294901760
    %105 = vmatpush.msra.mxu0 %v104
    %v106 = vand.u32 %v91, 4294901760
    %107 = vmatpush.msra.mxu0 %v106
    %v108 = vand.u32 %v90, 4294901760
    %109 = vmatpush.msra.mxu0 %v108
    %v110 = vand.u32 %v89, 4294901760
    %111 = vmatpush.msra.mxu0 %v110
    %v112 = vand.u32 %v88, 4294901760
    %113 = vmatpush.msra.mxu0 %v112
    %v114 = vand.u32 %v87, 4294901760
    %115 = vmatpush.msra.mxu0 %v114
    %v116 = vand.u32 %v86, 4294901760
    %117 = vmatpush.msra.mxu0 %v116
    %v118 = vand.u32 %v85, 4294901760
    %119 = vmatpush.msra.mxu0 %v118
    %v120 = vand.u32 %v84, 4294901760
    %121 = vmatpush.msra.mxu0 %v120
    %v122 = vand.u32 %v83, 4294901760
    %123 = vmatpush.msra.mxu0 %v122
    %v124 = vand.u32 %v82, 4294901760
    %125 = vmatpush.msra.mxu0 %v124
    %v126 = vand.u32 %v81, 4294901760
    %127 = vmatpush.msra.mxu0 %v126
    %v128 = vand.u32 %v80, 4294901760
    %129 = vmatpush.msra.mxu0 %v128
    %v130 = vand.u32 %v79, 4294901760
    %v131 = vsub.f32 %v79, %v130
    %v132 = vand.u32 %v131, 4294901760
    %v133 = vsub.f32 %v131, %v132
    %v134 = vand.u32 %v133, 4294901760
    %135 = vmatmul.f32.gmra.mxu0 %v134
    %v136 = vpop.f32.mrf.mxu0
    %v137 = vadd.f32 %v97, %v136
    %138 = vdwg.mxu0
    %v139 = vand.u32 %v95, 4294901760
    %v140 = vsub.f32 %v95, %v139
    %v141 = vand.u32 %v140, 4294901760
    %v142 = vsub.f32 %v140, %v141
    %v143 = vand.u32 %v142, 4294901760
    %144 = vmatpush.msra.mxu0 %v143
    %v145 = vand.u32 %v94, 4294901760
    %v146 = vsub.f32 %v94, %v145
    %v147 = vand.u32 %v146, 4294901760
    %v148 = vsub.f32 %v146, %v147
    %v149 = vand.u32 %v148, 4294901760
    %150 = vmatpush.msra.mxu0 %v149
    %v151 = vand.u32 %v93, 4294901760
    %v152 = vsub.f32 %v93, %v151
    %v153 = vand.u32 %v152, 4294901760
    %v154 = vsub.f32 %v152, %v153
    %v155 = vand.u32 %v154, 4294901760
    %156 = vmatpush.msra.mxu0 %v155
    %v157 = vand.u32 %v92, 4294901760
    %v158 = vsub.f32 %v92, %v157
    %v159 = vand.u32 %v158, 4294901760
    %v160 = vsub.f32 %v158, %v159
    %v161 = vand.u32 %v160, 4294901760
    %162 = vmatpush.msra.mxu0 %v161
    %v163 = vand.u32 %v91, 4294901760
    %v164 = vsub.f32 %v91, %v163
    %v165 = vand.u32 %v164, 4294901760
    %v166 = vsub.f32 %v164, %v165
    %v167 = vand.u32 %v166, 4294901760
    %168 = vmatpush.msra.mxu0 %v167
    %v169 = vand.u32 %v90, 4294901760
    %v170 = vsub.f32 %v90, %v169
    %v171 = vand.u32 %v170, 4294901760
    %v172 = vsub.f32 %v170, %v171
    %v173 = vand.u32 %v172, 4294901760
    %174 = vmatpush.msra.mxu0 %v173
    %v175 = vand.u32 %v89, 4294901760
    %v176 = vsub.f32 %v89, %v175
    %v177 = vand.u32 %v176, 4294901760
    %v178 = vsub.f32 %v176, %v177
    %v179 = vand.u32 %v178, 4294901760
    %180 = vmatpush.msra.mxu0 %v179
    %v181 = vand.u32 %v88, 4294901760
    %v182 = vsub.f32 %v88, %v181
    %v183 = vand.u32 %v182, 4294901760
    %v184 = vsub.f32 %v182, %v183
    %v185 = vand.u32 %v184, 4294901760
    %186 = vmatpush.msra.mxu0 %v185
    %v187 = vand.u32 %v87, 4294901760
    %v188 = vsub.f32 %v87, %v187
    %v189 = vand.u32 %v188, 4294901760
    %v190 = vsub.f32 %v188, %v189
    %v191 = vand.u32 %v190, 4294901760
    %192 = vmatpush.msra.mxu0 %v191
    %v193 = vand.u32 %v86, 4294901760
    %v194 = vsub.f32 %v86, %v193
    %v195 = vand.u32 %v194, 4294901760
    %v196 = vsub.f32 %v194, %v195
    %v197 = vand.u32 %v196, 4294901760
    %198 = vmatpush.msra.mxu0 %v197
    %v199 = vand.u32 %v85, 4294901760
    %v200 = vsub.f32 %v85, %v199
    %v201 = vand.u32 %v200, 4294901760
    %v202 = vsub.f32 %v200, %v201
    %v203 = vand.u32 %v202, 4294901760
    %204 = vmatpush.msra.mxu0 %v203
    %v205 = vand.u32 %v84, 4294901760
    %v206 = vsub.f32 %v84, %v205
    %v207 = vand.u32 %v206, 4294901760
    %v208 = vsub.f32 %v206, %v207
    %v209 = vand.u32 %v208, 4294901760
    %210 = vmatpush.msra.mxu0 %v209
    %v211 = vand.u32 %v83, 4294901760
    %v212 = vsub.f32 %v83, %v211
    %v213 = vand.u32 %v212, 4294901760
    %v214 = vsub.f32 %v212, %v213
    %v215 = vand.u32 %v214, 4294901760
    %216 = vmatpush.msra.mxu0 %v215
    %v217 = vand.u32 %v82, 4294901760
    %v218 = vsub.f32 %v82, %v217
    %v219 = vand.u32 %v218, 4294901760
    %v220 = vsub.f32 %v218, %v219
    %v221 = vand.u32 %v220, 4294901760
    %222 = vmatpush.msra.mxu0 %v221
    %v223 = vand.u32 %v81, 4294901760
    %v224 = vsub.f32 %v81, %v223
    %v225 = vand.u32 %v224, 4294901760
    %v226 = vsub.f32 %v224, %v225
    %v227 = vand.u32 %v226, 4294901760
    %228 = vmatpush.msra.mxu0 %v227
    %v229 = vand.u32 %v80, 4294901760
    %v230 = vsub.f32 %v80, %v229
    %v231 = vand.u32 %v230, 4294901760
    %v232 = vsub.f32 %v230, %v231
    %v233 = vand.u32 %v232, 4294901760
    %234 = vmatpush.msra.mxu0 %v233
    %v235 = vand.u32 %v79, 4294901760
    %236 = vmatmul.f32.gmra.mxu0 %v235
    %v237 = vpop.f32.mrf.mxu0
    %v238 = vadd.f32 %v137, %v237
    %239 = vdwg.mxu0
    %v240 = vand.u32 %v95, 4294901760
    %v241 = vsub.f32 %v95, %v240
    %242 = vmatpush.msra.mxu0 %v241
    %v243 = vand.u32 %v94, 4294901760
    %v244 = vsub.f32 %v94, %v243
    %245 = vmatpush.msra.mxu0 %v244
    %v246 = vand.u32 %v93, 4294901760
    %v247 = vsub.f32 %v93, %v246
    %248 = vmatpush.msra.mxu0 %v247
    %v249 = vand.u32 %v92, 4294901760
    %v250 = vsub.f32 %v92, %v249
    %251 = vmatpush.msra.mxu0 %v250
    %v252 = vand.u32 %v91, 4294901760
    %v253 = vsub.f32 %v91, %v252
    %254 = vmatpush.msra.mxu0 %v253
    %v255 = vand.u32 %v90, 4294901760
    %v256 = vsub.f32 %v90, %v255
    %257 = vmatpush.msra.mxu0 %v256
    %v258 = vand.u32 %v89, 4294901760
    %v259 = vsub.f32 %v89, %v258
    %260 = vmatpush.msra.mxu0 %v259
    %v261 = vand.u32 %v88, 4294901760
    %v262 = vsub.f32 %v88, %v261
    %263 = vmatpush.msra.mxu0 %v262
    %v264 = vand.u32 %v87, 4294901760
    %v265 = vsub.f32 %v87, %v264
    %266 = vmatpush.msra.mxu0 %v265
    %v267 = vand.u32 %v86, 4294901760
    %v268 = vsub.f32 %v86, %v267
    %269 = vmatpush.msra.mxu0 %v268
    %v270 = vand.u32 %v85, 4294901760
    %v271 = vsub.f32 %v85, %v270
    %272 = vmatpush.msra.mxu0 %v271
    %v273 = vand.u32 %v84, 4294901760
    %v274 = vsub.f32 %v84, %v273
    %275 = vmatpush.msra.mxu0 %v274
    %v276 = vand.u32 %v83, 4294901760
    %v277 = vsub.f32 %v83, %v276
    %278 = vmatpush.msra.mxu0 %v277
    %v279 = vand.u32 %v82, 4294901760
    %v280 = vsub.f32 %v82, %v279
    %281 = vmatpush.msra.mxu0 %v280
    %v282 = vand.u32 %v81, 4294901760
    %v283 = vsub.f32 %v81, %v282
    %284 = vmatpush.msra.mxu0 %v283
    %v285 = vand.u32 %v80, 4294901760
    %v286 = vsub.f32 %v80, %v285
    %287 = vmatpush.msra.mxu0 %v286
    %v288 = vand.u32 %v79, 4294901760
    %v289 = vsub.f32 %v79, %v288
    %290 = vmatmul.f32.gmra.mxu0 %v289
    %v291 = vpop.f32.mrf.mxu0
    %v292 = vadd.f32 %v238, %v291
    %293 = vdwg.mxu0
    %v294 = vand.u32 %v95, 4294901760
    %295 = vmatpush.msra.mxu0 %v294
    %v296 = vand.u32 %v94, 4294901760
    %297 = vmatpush.msra.mxu0 %v296
    %v298 = vand.u32 %v93, 4294901760
    %299 = vmatpush.msra.mxu0 %v298
    %v300 = vand.u32 %v92, 4294901760
    %301 = vmatpush.msra.mxu0 %v300
    %v302 = vand.u32 %v91, 4294901760
    %303 = vmatpush.msra.mxu0 %v302
    %v304 = vand.u32 %v90, 4294901760
    %305 = vmatpush.msra.mxu0 %v304
    %v306 = vand.u32 %v89, 4294901760
    %307 = vmatpush.msra.mxu0 %v306
    %v308 = vand.u32 %v88, 4294901760
    %309 = vmatpush.msra.mxu0 %v308
    %v310 = vand.u32 %v87, 4294901760
    %311 = vmatpush.msra.mxu0 %v310
    %v312 = vand.u32 %v86, 4294901760
    %313 = vmatpush.msra.mxu0 %v312
    %v314 = vand.u32 %v85, 4294901760
    %315 = vmatpush.msra.mxu0 %v314
    %v316 = vand.u32 %v84, 4294901760
    %317 = vmatpush.msra.mxu0 %v316
    %v318 = vand.u32 %v83, 4294901760
    %319 = vmatpush.msra.mxu0 %v318
    %v320 = vand.u32 %v82, 4294901760
    %321 = vmatpush.msra.mxu0 %v320
    %v322 = vand.u32 %v81, 4294901760
    %323 = vmatpush.msra.mxu0 %v322
    %v324 = vand.u32 %v80, 4294901760
    %325 = vmatpush.msra.mxu0 %v324
    %v326 = vand.u32 %v79, 4294901760
    %v327 = vsub.f32 %v79, %v326
    %v328 = vand.u32 %v327, 4294901760
    %329 = vmatmul.f32.gmra.mxu0 %v328
    %v330 = vpop.f32.mrf.mxu0
    %v331 = vadd.f32 %v292, %v330
    %332 = vdwg.mxu0
    %v333 = vand.u32 %v95, 4294901760
    %v334 = vsub.f32 %v95, %v333
    %v335 = vand.u32 %v334, 4294901760
    %336 = vmatpush.msra.mxu0 %v335
    %v337 = vand.u32 %v94, 4294901760
    %v338 = vsub.f32 %v94, %v337
    %v339 = vand.u32 %v338, 4294901760
    %340 = vmatpush.msra.mxu0 %v339
    %v341 = vand.u32 %v93, 4294901760
    %v342 = vsub.f32 %v93, %v341
    %v343 = vand.u32 %v342, 4294901760
    %344 = vmatpush.msra.mxu0 %v343
    %v345 = vand.u32 %v92, 4294901760
    %v346 = vsub.f32 %v92, %v345
    %v347 = vand.u32 %v346, 4294901760
    %348 = vmatpush.msra.mxu0 %v347
    %v349 = vand.u32 %v91, 4294901760
    %v350 = vsub.f32 %v91, %v349
    %v351 = vand.u32 %v350, 4294901760
    %352 = vmatpush.msra.mxu0 %v351
    %v353 = vand.u32 %v90, 4294901760
    %v354 = vsub.f32 %v90, %v353
    %v355 = vand.u32 %v354, 4294901760
    %356 = vmatpush.msra.mxu0 %v355
    %v357 = vand.u32 %v89, 4294901760
    %v358 = vsub.f32 %v89, %v357
    %v359 = vand.u32 %v358, 4294901760
    %360 = vmatpush.msra.mxu0 %v359
    %v361 = vand.u32 %v88, 4294901760
    %v362 = vsub.f32 %v88, %v361
    %v363 = vand.u32 %v362, 4294901760
    %364 = vmatpush.msra.mxu0 %v363
    %v365 = vand.u32 %v87, 4294901760
    %v366 = vsub.f32 %v87, %v365
    %v367 = vand.u32 %v366, 4294901760
    %368 = vmatpush.msra.mxu0 %v367
    %v369 = vand.u32 %v86, 4294901760
    %v370 = vsub.f32 %v86, %v369
    %v371 = vand.u32 %v370, 4294901760
    %372 = vmatpush.msra.mxu0 %v371
    %v373 = vand.u32 %v85, 4294901760
    %v374 = vsub.f32 %v85, %v373
    %v375 = vand.u32 %v374, 4294901760
    %376 = vmatpush.msra.mxu0 %v375
    %v377 = vand.u32 %v84, 4294901760
    %v378 = vsub.f32 %v84, %v377
    %v379 = vand.u32 %v378, 4294901760
    %380 = vmatpush.msra.mxu0 %v379
    %v381 = vand.u32 %v83, 4294901760
    %v382 = vsub.f32 %v83, %v381
    %v383 = vand.u32 %v382, 4294901760
    %384 = vmatpush.msra.mxu0 %v383
    %v385 = vand.u32 %v82, 4294901760
    %v386 = vsub.f32 %v82, %v385
    %v387 = vand.u32 %v386, 4294901760
    %388 = vmatpush.msra.mxu0 %v387
    %v389 = vand.u32 %v81, 4294901760
    %v390 = vsub.f32 %v81, %v389
    %v391 = vand.u32 %v390, 4294901760
    %392 = vmatpush.msra.mxu0 %v391
    %v393 = vand.u32 %v80, 4294901760
    %v394 = vsub.f32 %v80, %v393
    %v395 = vand.u32 %v394, 4294901760
    %396 = vmatpush.msra.mxu0 %v395
    %v397 = vand.u32 %v79, 4294901760
    %398 = vmatmul.f32.gmra.mxu0 %v397
    %v399 = vpop.f32.mrf.mxu0
    %v400 = vadd.f32 %v331, %v399
    %401 = vdwg.mxu0
    %v402 = vand.u32 %v95, 4294901760
    %403 = vmatpush.msra.mxu0 %v402
    %v404 = vand.u32 %v94, 4294901760
    %405 = vmatpush.msra.mxu0 %v404
    %v406 = vand.u32 %v93, 4294901760
    %407 = vmatpush.msra.mxu0 %v406
    %v408 = vand.u32 %v92, 4294901760
    %409 = vmatpush.msra.mxu0 %v408
    %v410 = vand.u32 %v91, 4294901760
    %411 = vmatpush.msra.mxu0 %v410
    %v412 = vand.u32 %v90, 4294901760
    %413 = vmatpush.msra.mxu0 %v412
    %v414 = vand.u32 %v89, 4294901760
    %415 = vmatpush.msra.mxu0 %v414
    %v416 = vand.u32 %v88, 4294901760
    %417 = vmatpush.msra.mxu0 %v416
    %v418 = vand.u32 %v87, 4294901760
    %419 = vmatpush.msra.mxu0 %v418
    %v420 = vand.u32 %v86, 4294901760
    %421 = vmatpush.msra.mxu0 %v420
    %v422 = vand.u32 %v85, 4294901760
    %423 = vmatpush.msra.mxu0 %v422
    %v424 = vand.u32 %v84, 4294901760
    %425 = vmatpush.msra.mxu0 %v424
    %v426 = vand.u32 %v83, 4294901760
    %427 = vmatpush.msra.mxu0 %v426
    %v428 = vand.u32 %v82, 4294901760
    %429 = vmatpush.msra.mxu0 %v428
    %v430 = vand.u32 %v81, 4294901760
    %431 = vmatpush.msra.mxu0 %v430
    %v432 = vand.u32 %v80, 4294901760
    %433 = vmatpush.msra.mxu0 %v432
    %v434 = vand.u32 %v79, 4294901760
    %435 = vmatmul.f32.gmra.mxu0 %v434
    %v436 = vpop.f32.mrf.mxu0
    %v437 = vadd.f32 %v400, %v436
    %438 = vdwg.mxu0
    %v439 = vmax.f32 %v437, 0.0
    %v440 = vand.u32 2147483647, %v437
    %v441 = vsub.f32 0.0, %v440
    %v442 = vmul.f32 %v441, 1.442695
    %v443 = vpow.pop %v442
    %v444 = vadd.f32 %v443, 1.0
    %v445 = vlog2.pop %v444
    %v446 = vmul.f32 %v445, 0.6931472
    %v447 = vmul.f32 -0.5, %v443
    %v448 = vadd.f32 %v447, 1.0
    %v449 = vmul.f32 %v448, %v443
    %v450 = vand.u32 2147483647, %v443
    %vm451 = vcmp.lt.f32.partialorder %v450, 0.0004427343
    %v452 = vsel %vm451, %v449, %v446
    %v453 = vadd.f32 %v439, %v452
    %v454 = vsub.f32 %v437, %v453
    %v455 = vmax.f32 %v454, -100.0
    %v456 = vsub.f32 0.0, %v453
    %v457 = vmax.f32 %v456, -100.0
    %v458 = vld [vmem:[%s69] sm:$0xff]
    %v459 = vmul.f32 %v458, %v455
    %v460 = vsub.f32 1.0, %v458
    %v461 = vmul.f32 %v460, %v457
    %v462 = vadd.f32 %v459, %v461
    %v463 = vsub.f32 0.0, %v462
    %s464 = sadd.s32 0, 0
    %s465 = sadd.s32 %s464, 1
    %s466 = smul.u32 %s465, 32
    %p467 = scmp.le.s32.totalorder %s466, 8
    // Predicated region
    $region22: #{tpu_custom_call.1} parent=1 // pred_check
      %p468 = pneg %p467
    $region23: #{tpu_custom_call.1} parent=1 // pred_check_branch
      %470 = sbr.rel (%p468) target = $region25
    $region24: #{tpu_custom_call.1} parent=1 // pred_region
      %v471 = vld [vmem:[#allocation2] sm:$0x1]
      %vm472 = vcmask 31744
      %v473 = vsel %vm472, %v463, 0.0
      %v474 = vrot.slane %v473, 4
      %v475 = vadd.f32 %v473, %v474
      %v476 = vrot.slane %v475, 2
      %v477 = vadd.f32 %v475, %v476
      %v478 = vrot.slane %v477, 1
      %v479 = vadd.f32 %v477, %v478
      %v480 = vadd.f32 %v471, %v479
      %vm481 = vcmask 24576
      %482 = vst.msk [vmem:[#allocation2] sm:$0x1] %vm481, %v480
    $region25: #{tpu_custom_call.1} parent=1 // pred_fallthru
      _
    %p483 = scmp.gt.s32.totalorder %s466, 8
    // Predicated region
    $region26: #{tpu_custom_call.1} parent=1 // pred_check
      %p484 = pneg %p483
    $region27: #{tpu_custom_call.1} parent=1 // pred_check_branch
      %486 = sbr.rel (%p484) target = $region29
    $region28: #{tpu_custom_call.1} parent=1 // pred_region
      %v487 = vlaneseq
      %v488 = vshrl.u32 %v487, 7
      %v489 = vlaneseq
      %v490 = vand.u32 %v489, 127
      %s491 = smul.u32 %s464, 8
      %v492 = vstv %s491
      %v493 = vadd.s32 %v492, %v488
      %v494 = vmul.u32 %v493, 4
      %v495 = vadd.s32 %v494, %v490
      %vm496 = vcmp.lt.s32.totalorder %v495, 8
      %v497 = vsel %vm496, %v463, 0.0
      %v498 = vld [vmem:[#allocation2] sm:$0x1]
      %vm499 = vcmask 31744
      %v500 = vsel %vm499, %v497, 0.0
      %v501 = vrot.slane %v500, 4
      %v502 = vadd.f32 %v500, %v501
      %v503 = vrot.slane %v502, 2
      %v504 = vadd.f32 %v502, %v503
      %v505 = vrot.slane %v504, 1
      %v506 = vadd.f32 %v504, %v505
      %v507 = vadd.f32 %v498, %v506
      %vm508 = vcmask 24576
      %509 = vst.msk [vmem:[#allocation2] sm:$0x1] %vm508, %v507
    $region29: #{tpu_custom_call.1} parent=1 // pred_fallthru
      _
    // Predicated region
    $region30: #{tpu_custom_call.1} parent=1 // pred_check
      %p510 = pneg %p73
    $region31: #{tpu_custom_call.1} parent=1 // pred_check_branch
      %512 = sbr.rel (%p510) target = $region33
    $region32: #{tpu_custom_call.1} parent=1 // pred_region
      %v513 = vld [vmem:[#allocation2] sm:$0x1]
      %vm514 = vcmask 24576
      %v515 = vsel %vm514, %v513, 0.0
      %516 = vadd.xlane.f32.xlu0 %v515
      %v517 = vpop.xlane.xlu0 %516
      %v518 = vrot.slane %v517, 4
      %v519 = vadd.f32 %v517, %v518
      %v520 = vrot.slane %v519, 2
      %v521 = vadd.f32 %v519, %v520
      %v522 = vrot.slane %v521, 1
      %v523 = vadd.f32 %v521, %v522
      %s524 = vtos %v523
      %v525 = vstv %s524
      %vm526 = vcmask 0
      %527 = vst.msk [vmem:[#allocation4] sm:$0x1] %vm526, %v525
    $region33: #{tpu_custom_call.1} parent=1 // pred_fallthru
      _
    // Predicated region
    $region34: #{tpu_custom_call.1} parent=1 // pred_check
      _
    $region35: #{tpu_custom_call.1} parent=1 // pred_check_branch
      %529 = sbr.rel (0) target = $region37
    $region36: #{tpu_custom_call.1} parent=1 // pred_region
      %531 = vsyncadd [#allocation5], 0
      %s533 = sshll.u32 [#allocation4], 4
      %s534 = int_to_ptr.vmem [resolvable:$true] %s533
      %s535 = sshll.u32 %s4, 4
      %s536 = int_to_ptr.hbm [resolvable:$true] %s535
      %538 = dma.vmem_to_hbm [thread:$0]  %s534, 16, %s536, [#allocation5]
    $region37: #{tpu_custom_call.1} parent=1 // pred_fallthru
      _
    // Predicated region
    $region38: #{tpu_custom_call.1} parent=1 // pred_check
      _
    $region39: #{tpu_custom_call.1} parent=1 // pred_check_branch
      %540 = sbr.rel (0) target = $region41
    $region40: #{tpu_custom_call.1} parent=1 // pred_region
      %542 = dma.done [#allocation5], 16
    $region41: #{tpu_custom_call.1} parent=1 // pred_fallthru
      _
    %543 = vsyncpa [#allocation5], 1

</llo_original>
